<compile_context>
chip_gen: v7x
topology: tpu7x:2x2x1
jax: 0.10.0
libtpu: 0.0.40
codegen_flags: <defaults>
</compile_context>

<pallas_src>
import functools

import jax
import jax.numpy as jnp
from jax import lax
from jax.experimental import pallas as pl
from jax.experimental.pallas import tpu as pltpu

MATMUL_DTYPE = jnp.bfloat16  # matmul-operand / weight / intermediate-activation dtype


def _round_up(x, m):
    return (x + m - 1) // m * m


def _pick_tile(dim, target):
    """Largest divisor of `dim` that is <= target (dim itself if small)."""
    if dim <= target:
        return dim
    for t in range(target, 0, -1):
        if dim % t == 0:
            return t
    return dim


def _nbytes(shape, dtype):
    n = 1
    for s in shape:
        n *= int(s)
    return n * jnp.dtype(dtype).itemsize


def _vmem_limit(est_bytes):
    # v7x has only 64 MiB VMEM per TensorCore -> never request more than 48 MiB,
    # but leave a generous floor so Mosaic internal scratch always fits.
    return int(min(max(2 * est_bytes, 32 * 1024 * 1024), 48 * 1024 * 1024))


# ----------------------------------------------------------------------------
# Embedding lookup kernel: one-hot(ids) @ table   (exact for a lookup)
# Tiled over rows of the flattened (T*B) index array.
# ----------------------------------------------------------------------------
def _embedding_kernel(ids_ref, table_ref, out_ref):
    rows = ids_ref.shape[0]
    ntoken = table_ref.shape[0]
    iota = lax.broadcasted_iota(jnp.int32, (rows, ntoken), 1)
    onehot = (iota == ids_ref[...]).astype(table_ref.dtype)
    out_ref[...] = jnp.dot(
        onehot, table_ref[...], preferred_element_type=jnp.float32
    ).astype(out_ref.dtype)


def embedding_lookup(table, ids, *, row_tile=256):
    """table: (ntoken, ninp) bf16, ids: (T, B) int32 -> (T, B, ninp) bf16."""
    # TODO(synk): for large vocabularies replace the one-hot matmul with a
    # scalar-prefetch / manual-DMA row gather; this form keeps the whole table
    # in VMEM and is only appropriate for small ntoken.
    T, B = ids.shape
    ntoken, ninp = table.shape
    N = T * B
    rt = min(row_tile, _round_up(N, 8))
    Np = _round_up(N, rt)
    ids_flat = ids.reshape(N).astype(jnp.int32)
    if Np != N:
        ids_flat = jnp.pad(ids_flat, (0, Np - N))  # padded rows use token 0, discarded
    ids2d = ids_flat.reshape(Np, 1)

    est = (2 * _nbytes((rt, 1), jnp.int32)
           + 2 * _nbytes((ntoken, ninp), table.dtype)
           + 2 * _nbytes((rt, ninp), MATMUL_DTYPE)
           + _nbytes((rt, ntoken), jnp.float32))

    out = pl.pallas_call(
        _embedding_kernel,
        out_shape=jax.ShapeDtypeStruct((Np, ninp), MATMUL_DTYPE),
        grid_spec=pltpu.PrefetchScalarGridSpec(
            num_scalar_prefetch=0,
            grid=(Np // rt,),
            in_specs=[
                pl.BlockSpec((rt, 1), lambda i: (i, 0)),
                pl.BlockSpec((ntoken, ninp), lambda i: (0, 0)),
            ],
            out_specs=pl.BlockSpec((rt, ninp), lambda i: (i, 0)),
        ),
        compiler_params=pltpu.CompilerParams(
            dimension_semantics=("parallel",),
            vmem_limit_bytes=_vmem_limit(est),
        ),
    )(ids2d, table)
    return out[:N].reshape(T, B, ninp)


# ----------------------------------------------------------------------------
# Fused LSTM layer kernel.
# Grid = (batch_tiles, time_chunks), dimension_semantics = (parallel, arbitrary).
# Per grid step:
#   1. gx = reshape(x_chunk) @ W_ih^T + b        (one big MXU matmul -> VMEM scratch)
#   2. unrolled recurrence over the chunk:  h @ W_hh^T + gx[t]  + gate math
# h/c carry state lives in the hT/cT output blocks (resident across the
# time-chunk axis; written back to HBM only after the last chunk).
# ----------------------------------------------------------------------------
def _lstm_layer_kernel(x_ref, h0_ref, c0_ref, w_ih_ref, w_hh_ref, b_ref,
                       y_ref, hT_ref, cT_ref, gx_scr,
                       *, nhid, tchunk, unroll):
    chunk = pl.program_id(1)

    @pl.when(chunk == 0)
    def _():
        hT_ref[...] = h0_ref[...]
        cT_ref[...] = c0_ref[...]

    H = nhid
    tb = h0_ref.shape[0]
    in_dim = x_ref.shape[-1]

    # Fused input projection for the whole time chunk (never touches HBM).
    x2d = x_ref[...].reshape(tchunk * tb, in_dim).astype(w_ih_ref.dtype)
    gx2d = jnp.dot(x2d, w_ih_ref[...], preferred_element_type=jnp.float32)
    gx_scr[...] = (gx2d + b_ref[...]).reshape(tchunk, tb, 4 * H)

    # TODO(synk): consider pltpu.matmul_push_rhs / matmul_acc_lhs / matmul_pop
    # to hold W_hh stationary in the MXU weight registers across the chunk.
    w_hh = w_hh_ref[...]  # (H, 4H) bf16, loaded once per chunk

    def step(t, carry):
        h, c = carry
        gates = gx_scr[t] + jnp.dot(
            h.astype(w_hh.dtype), w_hh, preferred_element_type=jnp.float32
        )
        i_g = jax.nn.sigmoid(gates[:, 0 * H:1 * H])
        f_g = jax.nn.sigmoid(gates[:, 1 * H:2 * H])
        g_g = jnp.tanh(gates[:, 2 * H:3 * H])
        o_g = jax.nn.sigmoid(gates[:, 3 * H:4 * H])
        c_new = f_g * c + i_g * g_g
        h_new = o_g * jnp.tanh(c_new)
        y_ref[t] = h_new.astype(y_ref.dtype)
        return h_new, c_new

    h_fin, c_fin = lax.fori_loop(
        0, tchunk, step, (hT_ref[...], cT_ref[...]), unroll=unroll
    )
    # Constant output block index along the chunk axis -> these stay resident
    # in VMEM and only hit HBM after the final chunk of this batch tile.
    hT_ref[...] = h_fin
    cT_ref[...] = c_fin


def lstm_layer(x, h0, c0, w_ih_t, w_hh_t, b, *, out_dtype=jnp.float32,
               time_chunk=None, batch_tile=None):
    """x: (T, B, IN) bf16, h0/c0: (B, H) f32, w_ih_t: (IN, 4H) bf16,
    w_hh_t: (H, 4H) bf16, b: (1, 4H) f32 -> (T, B, H) out_dtype, (B, H), (B, H)."""
    T, B, IN = x.shape
    H = w_hh_t.shape[0]
    assert w_ih_t.shape == (IN, 4 * H)

    tc = time_chunk if time_chunk is not None else _pick_tile(T, 16)
    if batch_tile is not None:
        tb = batch_tile
    else:
        # Split the parallel batch axis (megacore on v7x) only when each half
        # is still a good, sublane-aligned MXU tile.
        tb = B // 2 if (B >= 256 and B % 16 == 0) else B
    assert T % tc == 0 and B % tb == 0
    num_chunks = T // tc
    nb = B // tb

    # Cap unrolling once the per-step live gate value outgrows a few vregs.
    step_bytes = tb * 4 * H * 4
    unroll = True if step_bytes <= 64 * 1024 else 4

    est = (2 * _nbytes((tc, tb, IN), x.dtype)          # x chunk, double buffered
           + 2 * _nbytes((tc, tb, H), out_dtype)       # y chunk, double buffered
           + _nbytes((tc, tb, 4 * H), jnp.float32)     # gx scratch
           + 2 * _nbytes((IN, 4 * H), MATMUL_DTYPE)    # W_ih^T
           + 2 * _nbytes((H, 4 * H), MATMUL_DTYPE)     # W_hh^T
           + 2 * _nbytes((1, 4 * H), jnp.float32)      # bias
           + 8 * _nbytes((tb, H), jnp.float32))        # h0/c0/hT/cT

    kernel = functools.partial(_lstm_layer_kernel, nhid=H, tchunk=tc,
                               unroll=unroll)

    y, hT, cT = pl.pallas_call(
        kernel,
        out_shape=(
            jax.ShapeDtypeStruct((T, B, H), out_dtype),
            jax.ShapeDtypeStruct((B, H), jnp.float32),
            jax.ShapeDtypeStruct((B, H), jnp.float32),
        ),
        grid_spec=pltpu.PrefetchScalarGridSpec(
            num_scalar_prefetch=0,
            grid=(nb, num_chunks),
            in_specs=[
                pl.BlockSpec((tc, tb, IN), lambda bi, ci: (ci, bi, 0)),   # x
                pl.BlockSpec((tb, H), lambda bi, ci: (bi, 0)),            # h0
                pl.BlockSpec((tb, H), lambda bi, ci: (bi, 0)),            # c0
                pl.BlockSpec((IN, 4 * H), lambda bi, ci: (0, 0)),         # W_ih^T
                pl.BlockSpec((H, 4 * H), lambda bi, ci: (0, 0)),          # W_hh^T
                pl.BlockSpec((1, 4 * H), lambda bi, ci: (0, 0)),          # bias
            ],
            out_specs=[
                pl.BlockSpec((tc, tb, H), lambda bi, ci: (ci, bi, 0)),    # y chunk
                pl.BlockSpec((tb, H), lambda bi, ci: (bi, 0)),            # h_T
                pl.BlockSpec((tb, H), lambda bi, ci: (bi, 0)),            # c_T
            ],
            scratch_shapes=[pltpu.VMEM((tc, tb, 4 * H), jnp.float32)],    # gx
        ),
        compiler_params=pltpu.CompilerParams(
            # batch tiles independent (megacore on v7x); time is sequential
            dimension_semantics=("parallel", "arbitrary"),
            vmem_limit_bytes=_vmem_limit(est),
        ),
    )(x, h0, c0, w_ih_t, w_hh_t, b)
    return y, hT, cT


# ----------------------------------------------------------------------------
# RNN_lower forward: embedding -> nlayers LSTM -> (output, (h_n, c_n))
# ----------------------------------------------------------------------------
def rnn_lower_forward(params, input_ids, hidden, *, time_chunk=None,
                      batch_tile=None):
    h0, c0 = hidden                              # each (nlayers, B, H)
    nlayers = len(params["lstm"])
    x = embedding_lookup(params["emb"], input_ids)   # (T, B, ninp) bf16
    h_finals, c_finals = [], []
    for l, (w_ih_t, w_hh_t, b) in enumerate(params["lstm"]):
        # Intermediate-layer activations stay bf16 (they only feed the next
        # layer's bf16 matmul); final layer emits f32 (module output dtype).
        out_dtype = jnp.float32 if l == nlayers - 1 else MATMUL_DTYPE
        x, hT, cT = lstm_layer(x, h0[l], c0[l], w_ih_t, w_hh_t, b,
                               out_dtype=out_dtype, time_chunk=time_chunk,
                               batch_tile=batch_tile)
        h_finals.append(hT)
        c_finals.append(cT)
    return x, (jnp.stack(h_finals), jnp.stack(c_finals))


# ----------------------------------------------------------------------------
# Pure-JAX reference (same parameter dtypes / casts, for correctness check)
# ----------------------------------------------------------------------------
def rnn_lower_reference(params, input_ids, hidden):
    h0, c0 = hidden
    T, B = input_ids.shape
    nlayers = len(params["lstm"])
    x = jnp.take(params["emb"], input_ids.reshape(-1), axis=0).reshape(T, B, -1)
    hs, cs = [], []
    for l, (w_ih_t, w_hh_t, b) in enumerate(params["lstm"]):
        H = w_hh_t.shape[0]
        gx = (jnp.dot(x.reshape(T * B, -1).astype(MATMUL_DTYPE), w_ih_t,
                      preferred_element_type=jnp.float32) + b).reshape(T, B, 4 * H)
        h, c = h0[l], c0[l]
        ys = []
        for t in range(T):
            gates = gx[t] + jnp.dot(h.astype(MATMUL_DTYPE), w_hh_t,
                                    preferred_element_type=jnp.float32)
            i = jax.nn.sigmoid(gates[:, 0 * H:1 * H])
            f = jax.nn.sigmoid(gates[:, 1 * H:2 * H])
            g = jnp.tanh(gates[:, 2 * H:3 * H])
            o = jax.nn.sigmoid(gates[:, 3 * H:4 * H])
            c = f * c + i * g
            h = o * jnp.tanh(c)
            ys.append(h)
        y = jnp.stack(ys)
        out_dtype = jnp.float32 if l == nlayers - 1 else MATMUL_DTYPE
        x = y.astype(out_dtype)
        hs.append(h)
        cs.append(c)
    return x, (jnp.stack(hs), jnp.stack(cs))


# ----------------------------------------------------------------------------
# Deterministic parameter init (mirrors PyTorch defaults), with weights
# pre-transposed, biases pre-summed, matmul operands stored in bf16.
# ----------------------------------------------------------------------------
def init_params(key, ntoken, ninp, nhid, nlayers):
    k = 1.0 / float(nhid) ** 0.5
    key, ke = jax.random.split(key)
    emb = jax.random.uniform(ke, (ntoken, ninp), jnp.float32, -0.1, 0.1)
    lstm_params = []
    for l in range(nlayers):
        in_dim = ninp if l == 0 else nhid
        key, k1, k2, k3, k4 = jax.random.split(key, 5)
        w_ih = jax.random.uniform(k1, (4 * nhid, in_dim), jnp.float32, -k, k)
        w_hh = jax.random.uniform(k2, (4 * nhid, nhid), jnp.float32, -k, k)
        b_ih = jax.random.uniform(k3, (4 * nhid,), jnp.float32, -k, k)
        b_hh = jax.random.uniform(k4, (4 * nhid,), jnp.float32, -k, k)
        lstm_params.append((
            jnp.transpose(w_ih).astype(MATMUL_DTYPE),        # (IN, 4H)
            jnp.transpose(w_hh).astype(MATMUL_DTYPE),        # (H, 4H)
            (b_ih + b_hh).reshape(1, 4 * nhid).astype(jnp.float32),
        ))
    return {"emb": emb.astype(MATMUL_DTYPE), "lstm": lstm_params}


def _check_case(params, T, B, nhid, nlayers, ntoken, key, **kw):
    ids = jax.random.randint(key, (T, B), 0, ntoken, jnp.int32)
    h0 = jnp.zeros((nlayers, B, nhid), jnp.float32)
    c0 = jnp.zeros((nlayers, B, nhid), jnp.float32)
    out, (h_n, c_n) = rnn_lower_forward(params, ids, (h0, c0), **kw)
    jax.block_until_ready((out, h_n, c_n))
    ref_out, (ref_h, ref_c) = rnn_lower_reference(params, ids, (h0, c0))
    assert out.shape == (T, B, nhid)
    assert h_n.shape == (nlayers, B, nhid) and c_n.shape == (nlayers, B, nhid)
    assert jnp.allclose(out, ref_out, atol=1e-3, rtol=1e-3)
    assert jnp.allclose(h_n, ref_h, atol=1e-3, rtol=1e-3)
    assert jnp.allclose(c_n, ref_c, atol=1e-3, rtol=1e-3)


if __name__ == "__main__":
    # Small but hardware-aligned shapes (nhid multiple of 128, batch multiple
    # of 8) so gate slices are lane-aligned and stores are lane-dense.
    T, B, ninp, nhid, nlayers, ntoken = 32, 8, 128, 128, 2, 32

    key = jax.random.PRNGKey(0)
    key, ki1, ki2, ki3 = jax.random.split(key, 4)
    params = init_params(key, ntoken, ninp, nhid, nlayers)

    # Main case: T=32 -> 2 time chunks (exercises the resident h/c carry).
    _check_case(params, T, B, nhid, nlayers, ntoken, ki1)
    # T = 1 degenerate case.
    _check_case(params, 1, B, nhid, nlayers, ntoken, ki2)
    # Multiple batch tiles (parallel grid axis of extent 2).
    _check_case(params, 16, 16, nhid, nlayers, ntoken, ki3, batch_tile=8)

    print("KERNEL_OK")
</pallas_src>

<mosaic_0001>
module attributes {stable_mosaic.version = 11 : i64} {
  func.func @_embedding_kernel(%arg0: i32, %arg1: memref<256x1xi32, #tpu.memory_space<vmem>>, %arg2: memref<32x128xbf16, #tpu.memory_space<vmem>>, %arg3: memref<256x128xbf16, #tpu.memory_space<vmem>>) attributes {dimension_semantics = [#tpu.dimension_semantics<parallel>], iteration_bounds = array<i64: 1>, scalar_prefetch = 0 : i64, scratch_operands = 0 : i64, tpu.core_type = #tpu.core_type<tc>, window_params = [{transform_indices = @transform_0, window_bounds = array<i64: 256, 1>}, {pipeline_mode = #tpu.pipeline_mode<synchronous>, transform_indices = @transform_1, window_bounds = array<i64: 32, 128>}, {transform_indices = @transform_2, window_bounds = array<i64: 256, 128>}]} {
    %0 = tpu.iota {dimensions = array<i32: 1>} : vector<256x32xi32>
    %c0 = arith.constant 0 : index
    %c0_0 = arith.constant 0 : index
    %1 = vector.load %arg1[%c0, %c0_0] : memref<256x1xi32, #tpu.memory_space<vmem>>, vector<256x1xi32>
    %2 = vector.broadcast %1 : vector<256x1xi32> to vector<256x32xi32>
    %3 = arith.cmpi eq, %0, %2 : vector<256x32xi32>
    %4 = arith.extui %3 : vector<256x32xi1> to vector<256x32xi32>
    %5 = arith.sitofp %4 : vector<256x32xi32> to vector<256x32xf32>
    %6 = arith.truncf %5 : vector<256x32xf32> to vector<256x32xbf16>
    %c0_1 = arith.constant 0 : index
    %c0_2 = arith.constant 0 : index
    %7 = vector.load %arg2[%c0_1, %c0_2] : memref<32x128xbf16, #tpu.memory_space<vmem>>, vector<32x128xbf16>
    %cst = arith.constant dense<0.000000e+00> : vector<256x128xf32>
    %8 = tpu.matmul %6, %7, %cst {dimension_numbers = #tpu.dot_dimension_numbers<[1], [0], [0], [1], [0, 0, 1, 1], [], []>} : vector<256x32xbf16>, vector<32x128xbf16>, vector<256x128xf32> -> vector<256x128xf32>
    %9 = arith.truncf %8 : vector<256x128xf32> to vector<256x128xbf16>
    %c0_3 = arith.constant 0 : index
    %c0_4 = arith.constant 0 : index
    %10 = vector.load %arg3[%c0_3, %c0_4] : memref<256x128xbf16, #tpu.memory_space<vmem>>, vector<256x128xbf16>
    tpu.vector_store %arg3[%c0_3, %c0_4], %9 {strides = array<i32>} : memref<256x128xbf16, #tpu.memory_space<vmem>>, vector<256x128xbf16>,
    return
  }
  func.func @transform_0(%arg0: i32) -> (i32, i32) {
    %c0_i32 = arith.constant 0 : i32
    %c0_i32_0 = arith.constant 0 : i32
    return %arg0, %c0_i32 : i32, i32
  }
  func.func @transform_1(%arg0: i32) -> (i32, i32) {
    %c0_i32 = arith.constant 0 : i32
    %c0_i32_0 = arith.constant 0 : i32
    %c0_i32_1 = arith.constant 0 : i32
    return %c0_i32, %c0_i32_0 : i32, i32
  }
  func.func @transform_2(%arg0: i32) -> (i32, i32) {
    %c0_i32 = arith.constant 0 : i32
    %c0_i32_0 = arith.constant 0 : i32
    return %arg0, %c0_i32 : i32, i32
  }
}

</mosaic_0001>

<llo_original>
// kernel: tpu_custom_call.1
$region0: #{tpu_custom_call.1}
  #allocation0 [shape = 'u32[]', space=smem, size = 0x4, offset = 0x4, fixed_abs, tag = 'smem constant byte address 0x4 - core index']
  #allocation1 [shape = 'u32[144,128]{1,0:T(1,128)}', space=vmem, size = 0x12000, scoped, tag = 'internal scratch']
  %s0 = inlined_call_operand.vmem [shape: s32[256,1], index: 0, kind: input, shape index: {}]
  %s1 = inlined_call_operand.vmem [shape: bf16[32,128], index: 1, kind: input, shape index: {}]
  %s2 = inlined_call_operand.hbm [shape: bf16[256,128], index: 2, kind: output, shape index: {}]
  %s3 = sld [smem:[#allocation0]]
  $region18: #{tpu_custom_call.1} parent=0
    _
  %s5 = ssub.s32 1, %s3
  %s6 = scalar_select 0, %s5, %s3
  $region1: #{tpu_custom_call.1} parent=0
    #allocation2 [shape = 'u8[65536]{0}', space=vmem, size = 0x10000, scoped, tag = 'output window, operand 0, single buffered']
    #allocation3 [shape = 's32[1]{0}', space=sflag, size = 0x4, scoped, tag = 'scoped memory for tpu_custom_call.1']
    %7 = vsyncpa [#allocation3], 0
    // Predicated region
    $region2: #{tpu_custom_call.1} parent=1 // pred_check
      _
    $region3: #{tpu_custom_call.1} parent=1 // pred_check_branch
      %9 = sbr.rel (0) target = $region5
    $region4: #{tpu_custom_call.1} parent=1 // pred_region
      _
    $region5: #{tpu_custom_call.1} parent=1 // pred_fallthru
      _
    // Predicated region
    $region6: #{tpu_custom_call.1} parent=1 // pred_check
      _
    $region7: #{tpu_custom_call.1} parent=1 // pred_check_branch
      %11 = sbr.rel (0) target = $region9
    $region8: #{tpu_custom_call.1} parent=1 // pred_region
      _
    $region9: #{tpu_custom_call.1} parent=1 // pred_fallthru
      _
    %v13 = vlaneseq
    %v14 = vand.u32 %v13, 127
    %v15 = vld [vmem:[%s0] sm:$0xff]
    %v16 = vld [vmem:[%s0 + $0x8] sm:$0xff]
    %v17 = vld [vmem:[%s0 + $0x10] sm:$0xff]
    %v18 = vld [vmem:[%s0 + $0x18] sm:$0xff]
    %v19 = vld [vmem:[%s0 + $0x20] sm:$0xff]
    %v20 = vld [vmem:[%s0 + $0x28] sm:$0xff]
    %v21 = vld [vmem:[%s0 + $0x30] sm:$0xff]
    %v22 = vld [vmem:[%s0 + $0x38] sm:$0xff]
    %v23 = vld [vmem:[%s0 + $0x40] sm:$0xff]
    %v24 = vld [vmem:[%s0 + $0x48] sm:$0xff]
    %v25 = vld [vmem:[%s0 + $0x50] sm:$0xff]
    %v26 = vld [vmem:[%s0 + $0x58] sm:$0xff]
    %v27 = vld [vmem:[%s0 + $0x60] sm:$0xff]
    %v28 = vld [vmem:[%s0 + $0x68] sm:$0xff]
    %v29 = vld [vmem:[%s0 + $0x70] sm:$0xff]
    %v30 = vld [vmem:[%s0 + $0x78] sm:$0xff]
    %v31 = vld [vmem:[%s0 + $0x80] sm:$0xff]
    %v32 = vld [vmem:[%s0 + $0x88] sm:$0xff]
    %v33 = vld [vmem:[%s0 + $0x90] sm:$0xff]
    %v34 = vld [vmem:[%s0 + $0x98] sm:$0xff]
    %v35 = vld [vmem:[%s0 + $0xa0] sm:$0xff]
    %v36 = vld [vmem:[%s0 + $0xa8] sm:$0xff]
    %v37 = vld [vmem:[%s0 + $0xb0] sm:$0xff]
    %v38 = vld [vmem:[%s0 + $0xb8] sm:$0xff]
    %v39 = vld [vmem:[%s0 + $0xc0] sm:$0xff]
    %v40 = vld [vmem:[%s0 + $0xc8] sm:$0xff]
    %v41 = vld [vmem:[%s0 + $0xd0] sm:$0xff]
    %v42 = vld [vmem:[%s0 + $0xd8] sm:$0xff]
    %v43 = vld [vmem:[%s0 + $0xe0] sm:$0xff]
    %v44 = vld [vmem:[%s0 + $0xe8] sm:$0xff]
    %v45 = vld [vmem:[%s0 + $0xf0] sm:$0xff]
    %v46 = vld [vmem:[%s0 + $0xf8] sm:$0xff]
    %47 = vset.pattern.permute.xlu0 0
    %48 = vperm.xlu0 %47, %v15
    %v49 = vpop.permute.xlu0 %48
    %50 = vset.pattern.permute.xlu0 0
    %51 = vperm.xlu0 %50, %v16
    %v52 = vpop.permute.xlu0 %51
    %53 = vset.pattern.permute.xlu0 0
    %54 = vperm.xlu0 %53, %v17
    %v55 = vpop.permute.xlu0 %54
    %56 = vset.pattern.permute.xlu0 0
    %57 = vperm.xlu0 %56, %v18
    %v58 = vpop.permute.xlu0 %57
    %59 = vset.pattern.permute.xlu0 0
    %60 = vperm.xlu0 %59, %v19
    %v61 = vpop.permute.xlu0 %60
    %62 = vset.pattern.permute.xlu0 0
    %63 = vperm.xlu0 %62, %v20
    %v64 = vpop.permute.xlu0 %63
    %65 = vset.pattern.permute.xlu0 0
    %66 = vperm.xlu0 %65, %v21
    %v67 = vpop.permute.xlu0 %66
    %68 = vset.pattern.permute.xlu0 0
    %69 = vperm.xlu0 %68, %v22
    %v70 = vpop.permute.xlu0 %69
    %71 = vset.pattern.permute.xlu0 0
    %72 = vperm.xlu0 %71, %v23
    %v73 = vpop.permute.xlu0 %72
    %74 = vset.pattern.permute.xlu0 0
    %75 = vperm.xlu0 %74, %v24
    %v76 = vpop.permute.xlu0 %75
    %77 = vset.pattern.permute.xlu0 0
    %78 = vperm.xlu0 %77, %v25
    %v79 = vpop.permute.xlu0 %78
    %80 = vset.pattern.permute.xlu0 0
    %81 = vperm.xlu0 %80, %v26
    %v82 = vpop.permute.xlu0 %81
    %83 = vset.pattern.permute.xlu0 0
    %84 = vperm.xlu0 %83, %v27
    %v85 = vpop.permute.xlu0 %84
    %86 = vset.pattern.permute.xlu0 0
    %87 = vperm.xlu0 %86, %v28
    %v88 = vpop.permute.xlu0 %87
    %89 = vset.pattern.permute.xlu0 0
    %90 = vperm.xlu0 %89, %v29
    %v91 = vpop.permute.xlu0 %90
    %92 = vset.pattern.permute.xlu0 0
    %93 = vperm.xlu0 %92, %v30
    %v94 = vpop.permute.xlu0 %93
    %95 = vset.pattern.permute.xlu0 0
    %96 = vperm.xlu0 %95, %v31
    %v97 = vpop.permute.xlu0 %96
    %98 = vset.pattern.permute.xlu0 0
    %99 = vperm.xlu0 %98, %v32
    %v100 = vpop.permute.xlu0 %99
    %101 = vset.pattern.permute.xlu0 0
    %102 = vperm.xlu0 %101, %v33
    %v103 = vpop.permute.xlu0 %102
    %104 = vset.pattern.permute.xlu0 0
    %105 = vperm.xlu0 %104, %v34
    %v106 = vpop.permute.xlu0 %105
    %107 = vset.pattern.permute.xlu0 0
    %108 = vperm.xlu0 %107, %v35
    %v109 = vpop.permute.xlu0 %108
    %110 = vset.pattern.permute.xlu0 0
    %111 = vperm.xlu0 %110, %v36
    %v112 = vpop.permute.xlu0 %111
    %113 = vset.pattern.permute.xlu0 0
    %114 = vperm.xlu0 %113, %v37
    %v115 = vpop.permute.xlu0 %114
    %116 = vset.pattern.permute.xlu0 0
    %117 = vperm.xlu0 %116, %v38
    %v118 = vpop.permute.xlu0 %117
    %119 = vset.pattern.permute.xlu0 0
    %120 = vperm.xlu0 %119, %v39
    %v121 = vpop.permute.xlu0 %120
    %122 = vset.pattern.permute.xlu0 0
    %123 = vperm.xlu0 %122, %v40
    %v124 = vpop.permute.xlu0 %123
    %125 = vset.pattern.permute.xlu0 0
    %126 = vperm.xlu0 %125, %v41
    %v127 = vpop.permute.xlu0 %126
    %128 = vset.pattern.permute.xlu0 0
    %129 = vperm.xlu0 %128, %v42
    %v130 = vpop.permute.xlu0 %129
    %131 = vset.pattern.permute.xlu0 0
    %132 = vperm.xlu0 %131, %v43
    %v133 = vpop.permute.xlu0 %132
    %134 = vset.pattern.permute.xlu0 0
    %135 = vperm.xlu0 %134, %v44
    %v136 = vpop.permute.xlu0 %135
    %137 = vset.pattern.permute.xlu0 0
    %138 = vperm.xlu0 %137, %v45
    %v139 = vpop.permute.xlu0 %138
    %140 = vset.pattern.permute.xlu0 0
    %141 = vperm.xlu0 %140, %v46
    %v142 = vpop.permute.xlu0 %141
    %vm143 = vcmp.eq.s32.totalorder %v14, %v49
    %vm144 = vcmp.eq.s32.totalorder %v14, %v52
    %vm145 = vcmp.eq.s32.totalorder %v14, %v55
    %vm146 = vcmp.eq.s32.totalorder %v14, %v58
    %vm147 = vcmp.eq.s32.totalorder %v14, %v61
    %vm148 = vcmp.eq.s32.totalorder %v14, %v64
    %vm149 = vcmp.eq.s32.totalorder %v14, %v67
    %vm150 = vcmp.eq.s32.totalorder %v14, %v70
    %vm151 = vcmp.eq.s32.totalorder %v14, %v73
    %vm152 = vcmp.eq.s32.totalorder %v14, %v76
    %vm153 = vcmp.eq.s32.totalorder %v14, %v79
    %vm154 = vcmp.eq.s32.totalorder %v14, %v82
    %vm155 = vcmp.eq.s32.totalorder %v14, %v85
    %vm156 = vcmp.eq.s32.totalorder %v14, %v88
    %vm157 = vcmp.eq.s32.totalorder %v14, %v91
    %vm158 = vcmp.eq.s32.totalorder %v14, %v94
    %vm159 = vcmp.eq.s32.totalorder %v14, %v97
    %vm160 = vcmp.eq.s32.totalorder %v14, %v100
    %vm161 = vcmp.eq.s32.totalorder %v14, %v103
    %vm162 = vcmp.eq.s32.totalorder %v14, %v106
    %vm163 = vcmp.eq.s32.totalorder %v14, %v109
    %vm164 = vcmp.eq.s32.totalorder %v14, %v112
    %vm165 = vcmp.eq.s32.totalorder %v14, %v115
    %vm166 = vcmp.eq.s32.totalorder %v14, %v118
    %vm167 = vcmp.eq.s32.totalorder %v14, %v121
    %vm168 = vcmp.eq.s32.totalorder %v14, %v124
    %vm169 = vcmp.eq.s32.totalorder %v14, %v127
    %vm170 = vcmp.eq.s32.totalorder %v14, %v130
    %vm171 = vcmp.eq.s32.totalorder %v14, %v133
    %vm172 = vcmp.eq.s32.totalorder %v14, %v136
    %vm173 = vcmp.eq.s32.totalorder %v14, %v139
    %vm174 = vcmp.eq.s32.totalorder %v14, %v142
    %v175 = vsel %vm143, 1, 0
    %v176 = vsel %vm144, 1, 0
    %v177 = vsel %vm145, 1, 0
    %v178 = vsel %vm146, 1, 0
    %v179 = vsel %vm147, 1, 0
    %v180 = vsel %vm148, 1, 0
    %v181 = vsel %vm149, 1, 0
    %v182 = vsel %vm150, 1, 0
    %v183 = vsel %vm151, 1, 0
    %v184 = vsel %vm152, 1, 0
    %v185 = vsel %vm153, 1, 0
    %v186 = vsel %vm154, 1, 0
    %v187 = vsel %vm155, 1, 0
    %v188 = vsel %vm156, 1, 0
    %v189 = vsel %vm157, 1, 0
    %v190 = vsel %vm158, 1, 0
    %v191 = vsel %vm159, 1, 0
    %v192 = vsel %vm160, 1, 0
    %v193 = vsel %vm161, 1, 0
    %v194 = vsel %vm162, 1, 0
    %v195 = vsel %vm163, 1, 0
    %v196 = vsel %vm164, 1, 0
    %v197 = vsel %vm165, 1, 0
    %v198 = vsel %vm166, 1, 0
    %v199 = vsel %vm167, 1, 0
    %v200 = vsel %vm168, 1, 0
    %v201 = vsel %vm169, 1, 0
    %v202 = vsel %vm170, 1, 0
    %v203 = vsel %vm171, 1, 0
    %v204 = vsel %vm172, 1, 0
    %v205 = vsel %vm173, 1, 0
    %v206 = vsel %vm174, 1, 0
    %v207 = vcvt.s32.f32 %v175
    %v208 = vcvt.s32.f32 %v176
    %v209 = vcvt.s32.f32 %v177
    %v210 = vcvt.s32.f32 %v178
    %v211 = vcvt.s32.f32 %v179
    %v212 = vcvt.s32.f32 %v180
    %v213 = vcvt.s32.f32 %v181
    %v214 = vcvt.s32.f32 %v182
    %v215 = vcvt.s32.f32 %v183
    %v216 = vcvt.s32.f32 %v184
    %v217 = vcvt.s32.f32 %v185
    %v218 = vcvt.s32.f32 %v186
    %v219 = vcvt.s32.f32 %v187
    %v220 = vcvt.s32.f32 %v188
    %v221 = vcvt.s32.f32 %v189
    %v222 = vcvt.s32.f32 %v190
    %v223 = vcvt.s32.f32 %v191
    %v224 = vcvt.s32.f32 %v192
    %v225 = vcvt.s32.f32 %v193
    %v226 = vcvt.s32.f32 %v194
    %v227 = vcvt.s32.f32 %v195
    %v228 = vcvt.s32.f32 %v196
    %v229 = vcvt.s32.f32 %v197
    %v230 = vcvt.s32.f32 %v198
    %v231 = vcvt.s32.f32 %v199
    %v232 = vcvt.s32.f32 %v200
    %v233 = vcvt.s32.f32 %v201
    %v234 = vcvt.s32.f32 %v202
    %v235 = vcvt.s32.f32 %v203
    %v236 = vcvt.s32.f32 %v204
    %v237 = vcvt.s32.f32 %v205
    %v238 = vcvt.s32.f32 %v206
    %v239 = vpack.c.bf16 %v208, %v207
    %v240 = vpack.c.bf16 %v210, %v209
    %v241 = vpack.c.bf16 %v212, %v211
    %v242 = vpack.c.bf16 %v214, %v213
    %v243 = vpack.c.bf16 %v216, %v215
    %v244 = vpack.c.bf16 %v218, %v217
    %v245 = vpack.c.bf16 %v220, %v219
    %v246 = vpack.c.bf16 %v222, %v221
    %v247 = vpack.c.bf16 %v224, %v223
    %v248 = vpack.c.bf16 %v226, %v225
    %v249 = vpack.c.bf16 %v228, %v227
    %v250 = vpack.c.bf16 %v230, %v229
    %v251 = vpack.c.bf16 %v232, %v231
    %v252 = vpack.c.bf16 %v234, %v233
    %v253 = vpack.c.bf16 %v236, %v235
    %v254 = vpack.c.bf16 %v238, %v237
    %v255 = vld [vmem:[%s1] sm:$0xf]
    %v256 = vld [vmem:[%s1 + $0x4] sm:$0xf]
    %v257 = vld [vmem:[%s1 + $0x8] sm:$0xf]
    %v258 = vld [vmem:[%s1 + $0xc] sm:$0xf]
    %v263 = vunpack.c.l.b16 %v255
    %v264 = vunpack.c.l.b16 %v256
    %v265 = vunpack.c.l.b16 %v257
    %v266 = vunpack.c.l.b16 %v258
    %v267 = vpack.c.b16 %v264, %v263
    %v268 = vpack.c.b16 %v266, %v265
    %vm271 = vcmask 261120
    %v273 = vsel %vm271, %v239, 0
    %v276 = vsel %vm271, %v240, 0
    %v279 = vsel %vm271, %v241, 0
    %v282 = vsel %vm271, %v242, 0
    %v285 = vsel %vm271, %v243, 0
    %v288 = vsel %vm271, %v244, 0
    %v291 = vsel %vm271, %v245, 0
    %v294 = vsel %vm271, %v246, 0
    %v297 = vsel %vm271, %v247, 0
    %v300 = vsel %vm271, %v248, 0
    %v303 = vsel %vm271, %v249, 0
    %v306 = vsel %vm271, %v250, 0
    %v309 = vsel %vm271, %v251, 0
    %v312 = vsel %vm271, %v252, 0
    %v315 = vsel %vm271, %v253, 0
    %v318 = vsel %vm271, %v254, 0
    %320 = vmatprep.subr.bf16.mxu0 0
    %321 = vmatpush1.bf16.msra.mxu0 %v267
    %322 = vmatprep.subr.bf16.mxu0 0
    %323 = vmatpush1.bf16.msra.mxu0 %v268
    %324 = vmatprep.subr.bf16.mxu0 0
    %325 = vmatpush1.bf16.msra.mxu0 0
    %326 = vmatprep.subr.bf16.mxu0 0
    %327 = vmatpush1.bf16.msra.mxu0 0
    %328 = vmatprep.subr.bf16.mxu0 0
    %329 = vmatpush1.bf16.msra.mxu0 0
    %330 = vmatprep.subr.bf16.mxu0 0
    %331 = vmatpush1.bf16.msra.mxu0 0
    %332 = vmatprep.subr.bf16.mxu0 0
    %333 = vmatpush1.bf16.msra.mxu0 0
    %334 = vmatprep.subr.bf16.mxu0 0
    %335 = vmatpush1.bf16.msra.mxu0 0
    %336 = vmatprep.subr.bf16.mxu0 0
    %337 = vmatpush1.bf16.msra.mxu0 0
    %338 = vmatprep.subr.bf16.mxu0 0
    %339 = vmatpush1.bf16.msra.mxu0 0
    %340 = vmatprep.subr.bf16.mxu0 0
    %341 = vmatpush1.bf16.msra.mxu0 0
    %342 = vmatprep.subr.bf16.mxu0 0
    %343 = vmatpush1.bf16.msra.mxu0 0
    %344 = vmatprep.subr.bf16.mxu0 0
    %345 = vmatpush1.bf16.msra.mxu0 0
    %346 = vmatprep.subr.bf16.mxu0 0
    %347 = vmatpush1.bf16.msra.mxu0 0
    %348 = vmatprep.subr.bf16.mxu0 0
    %349 = vmatpush1.bf16.msra.mxu0 0
    %350 = vmatprep.subr.bf16.mxu0 0
    %351 = vmatpush1.bf16.msra.mxu0 0
    %352 = vmatprep.mubr.bf16.mxu0 0
    %353 = vmatmul.mubr.bf16.gmra.mrb[0].mxu0 %v273
    %v354 = vpop.f32.mrb[0].mxu0
    %v355 = vadd.f32 0.0, %v354
    %v356 = vpop.f32.mrb[0].mxu0
    %v357 = vpop.f32.mrb[0].mxu0
    %v358 = vadd.f32 0.0, %v357
    %v359 = vpop.f32.mrb[0].mxu0
    %360 = vmatprep.mubr.bf16.mxu0 0
    %361 = vmatmul.mubr.bf16.gmra.mrb[0].mxu0 %v276
    %v362 = vpop.f32.mrb[0].mxu0
    %v363 = vadd.f32 0.0, %v362
    %v364 = vpop.f32.mrb[0].mxu0
    %v365 = vpop.f32.mrb[0].mxu0
    %v366 = vadd.f32 0.0, %v365
    %v367 = vpop.f32.mrb[0].mxu0
    %368 = vmatprep.mubr.bf16.mxu0 0
    %369 = vmatmul.mubr.bf16.gmra.mrb[0].mxu0 %v279
    %v370 = vpop.f32.mrb[0].mxu0
    %v371 = vadd.f32 0.0, %v370
    %v372 = vpop.f32.mrb[0].mxu0
    %v373 = vpop.f32.mrb[0].mxu0
    %v374 = vadd.f32 0.0, %v373
    %v375 = vpop.f32.mrb[0].mxu0
    %376 = vmatprep.mubr.bf16.mxu0 0
    %377 = vmatmul.mubr.bf16.gmra.mrb[0].mxu0 %v282
    %v378 = vpop.f32.mrb[0].mxu0
    %v379 = vadd.f32 0.0, %v378
    %v380 = vpop.f32.mrb[0].mxu0
    %v381 = vpop.f32.mrb[0].mxu0
    %v382 = vadd.f32 0.0, %v381
    %v383 = vpop.f32.mrb[0].mxu0
    %384 = vmatprep.mubr.bf16.mxu0 0
    %385 = vmatmul.mubr.bf16.gmra.mrb[0].mxu0 %v285
    %v386 = vpop.f32.mrb[0].mxu0
    %v387 = vadd.f32 0.0, %v386
    %v388 = vpop.f32.mrb[0].mxu0
    %v389 = vpop.f32.mrb[0].mxu0
    %v390 = vadd.f32 0.0, %v389
    %v391 = vpop.f32.mrb[0].mxu0
    %392 = vmatprep.mubr.bf16.mxu0 0
    %393 = vmatmul.mubr.bf16.gmra.mrb[0].mxu0 %v288
    %v394 = vpop.f32.mrb[0].mxu0
    %v395 = vadd.f32 0.0, %v394
    %v396 = vpop.f32.mrb[0].mxu0
    %v397 = vpop.f32.mrb[0].mxu0
    %v398 = vadd.f32 0.0, %v397
    %v399 = vpop.f32.mrb[0].mxu0
    %400 = vmatprep.mubr.bf16.mxu0 0
    %401 = vmatmul.mubr.bf16.gmra.mrb[0].mxu0 %v291
    %v402 = vpop.f32.mrb[0].mxu0
    %v403 = vadd.f32 0.0, %v402
    %v404 = vpop.f32.mrb[0].mxu0
    %v405 = vpop.f32.mrb[0].mxu0
    %v406 = vadd.f32 0.0, %v405
    %v407 = vpop.f32.mrb[0].mxu0
    %408 = vmatprep.mubr.bf16.mxu0 0
    %409 = vmatmul.mubr.bf16.gmra.mrb[0].mxu0 %v294
    %v410 = vpop.f32.mrb[0].mxu0
    %v411 = vadd.f32 0.0, %v410
    %v412 = vpop.f32.mrb[0].mxu0
    %v413 = vpop.f32.mrb[0].mxu0
    %v414 = vadd.f32 0.0, %v413
    %v415 = vpop.f32.mrb[0].mxu0
    %416 = vmatprep.mubr.bf16.mxu0 0
    %417 = vmatmul.mubr.bf16.gmra.mrb[0].mxu0 %v297
    %v418 = vpop.f32.mrb[0].mxu0
    %v419 = vadd.f32 0.0, %v418
    %v420 = vpop.f32.mrb[0].mxu0
    %v421 = vpop.f32.mrb[0].mxu0
    %v422 = vadd.f32 0.0, %v421
    %v423 = vpop.f32.mrb[0].mxu0
    %424 = vmatprep.mubr.bf16.mxu0 0
    %425 = vmatmul.mubr.bf16.gmra.mrb[0].mxu0 %v300
    %v426 = vpop.f32.mrb[0].mxu0
    %v427 = vadd.f32 0.0, %v426
    %v428 = vpop.f32.mrb[0].mxu0
    %v429 = vpop.f32.mrb[0].mxu0
    %v430 = vadd.f32 0.0, %v429
    %v431 = vpop.f32.mrb[0].mxu0
    %432 = vmatprep.mubr.bf16.mxu0 0
    %433 = vmatmul.mubr.bf16.gmra.mrb[0].mxu0 %v303
    %v434 = vpop.f32.mrb[0].mxu0
    %v435 = vadd.f32 0.0, %v434
    %v436 = vpop.f32.mrb[0].mxu0
    %v437 = vpop.f32.mrb[0].mxu0
    %v438 = vadd.f32 0.0, %v437
    %v439 = vpop.f32.mrb[0].mxu0
    %440 = vmatprep.mubr.bf16.mxu0 0
    %441 = vmatmul.mubr.bf16.gmra.mrb[0].mxu0 %v306
    %v442 = vpop.f32.mrb[0].mxu0
    %v443 = vadd.f32 0.0, %v442
    %v444 = vpop.f32.mrb[0].mxu0
    %v445 = vpop.f32.mrb[0].mxu0
    %v446 = vadd.f32 0.0, %v445
    %v447 = vpop.f32.mrb[0].mxu0
    %448 = vmatprep.mubr.bf16.mxu0 0
    %449 = vmatmul.mubr.bf16.gmra.mrb[0].mxu0 %v309
    %v450 = vpop.f32.mrb[0].mxu0
    %v451 = vadd.f32 0.0, %v450
    %v452 = vpop.f32.mrb[0].mxu0
    %v453 = vpop.f32.mrb[0].mxu0
    %v454 = vadd.f32 0.0, %v453
    %v455 = vpop.f32.mrb[0].mxu0
    %456 = vmatprep.mubr.bf16.mxu0 0
    %457 = vmatmul.mubr.bf16.gmra.mrb[0].mxu0 %v312
    %v458 = vpop.f32.mrb[0].mxu0
    %v459 = vadd.f32 0.0, %v458
    %v460 = vpop.f32.mrb[0].mxu0
    %v461 = vpop.f32.mrb[0].mxu0
    %v462 = vadd.f32 0.0, %v461
    %v463 = vpop.f32.mrb[0].mxu0
    %464 = vmatprep.mubr.bf16.mxu0 0
    %465 = vmatmul.mubr.bf16.gmra.mrb[0].mxu0 %v315
    %v466 = vpop.f32.mrb[0].mxu0
    %v467 = vadd.f32 0.0, %v466
    %v468 = vpop.f32.mrb[0].mxu0
    %v469 = vpop.f32.mrb[0].mxu0
    %v470 = vadd.f32 0.0, %v469
    %v471 = vpop.f32.mrb[0].mxu0
    %472 = vmatprep.mubr.bf16.mxu0 0
    %473 = vmatmul.mubr.bf16.gmra.mrb[0].mxu0 %v318
    %v474 = vpop.f32.mrb[0].mxu0
    %v475 = vadd.f32 0.0, %v474
    %v476 = vpop.f32.mrb[0].mxu0
    %v477 = vpop.f32.mrb[0].mxu0
    %v478 = vadd.f32 0.0, %v477
    %v479 = vpop.f32.mrb[0].mxu0
    %480 = vdwg.mxu0
    %v481 = vpack.c.bf16 %v358, %v355
    %v482 = vpack.c.bf16 %v366, %v363
    %v483 = vpack.c.bf16 %v374, %v371
    %v484 = vpack.c.bf16 %v382, %v379
    %v485 = vpack.c.bf16 %v390, %v387
    %v486 = vpack.c.bf16 %v398, %v395
    %v487 = vpack.c.bf16 %v406, %v403
    %v488 = vpack.c.bf16 %v414, %v411
    %v489 = vpack.c.bf16 %v422, %v419
    %v490 = vpack.c.bf16 %v430, %v427
    %v491 = vpack.c.bf16 %v438, %v435
    %v492 = vpack.c.bf16 %v446, %v443
    %v493 = vpack.c.bf16 %v454, %v451
    %v494 = vpack.c.bf16 %v462, %v459
    %v495 = vpack.c.bf16 %v470, %v467
    %v496 = vpack.c.bf16 %v478, %v475
    %v513 = vunpack.c.l.b16 %v481
    %v514 = vunpack.c.h.b16 %v481
    %v515 = vunpack.c.l.b16 %v482
    %v516 = vunpack.c.h.b16 %v482
    %v517 = vunpack.c.l.b16 %v483
    %v518 = vunpack.c.h.b16 %v483
    %v519 = vunpack.c.l.b16 %v484
    %v520 = vunpack.c.h.b16 %v484
    %v521 = vunpack.c.l.b16 %v485
    %v522 = vunpack.c.h.b16 %v485
    %v523 = vunpack.c.l.b16 %v486
    %v524 = vunpack.c.h.b16 %v486
    %v525 = vunpack.c.l.b16 %v487
    %v526 = vunpack.c.h.b16 %v487
    %v527 = vunpack.c.l.b16 %v488
    %v528 = vunpack.c.h.b16 %v488
    %v529 = vunpack.c.l.b16 %v489
    %v530 = vunpack.c.h.b16 %v489
    %v531 = vunpack.c.l.b16 %v490
    %v532 = vunpack.c.h.b16 %v490
    %v533 = vunpack.c.l.b16 %v491
    %v534 = vunpack.c.h.b16 %v491
    %v535 = vunpack.c.l.b16 %v492
    %v536 = vunpack.c.h.b16 %v492
    %v537 = vunpack.c.l.b16 %v493
    %v538 = vunpack.c.h.b16 %v493
    %v539 = vunpack.c.l.b16 %v494
    %v540 = vunpack.c.h.b16 %v494
    %v541 = vunpack.c.l.b16 %v495
    %v542 = vunpack.c.h.b16 %v495
    %v543 = vunpack.c.l.b16 %v496
    %v544 = vunpack.c.h.b16 %v496
    %v545 = vpack.c.b16 %v513, %v513
    %v546 = vpack.c.b16 %v514, %v514
    %v547 = vpack.c.b16 %v515, %v515
    %v548 = vpack.c.b16 %v516, %v516
    %v549 = vpack.c.b16 %v517, %v517
    %v550 = vpack.c.b16 %v518, %v518
    %v551 = vpack.c.b16 %v519, %v519
    %v552 = vpack.c.b16 %v520, %v520
    %v553 = vpack.c.b16 %v521, %v521
    %v554 = vpack.c.b16 %v522, %v522
    %v555 = vpack.c.b16 %v523, %v523
    %v556 = vpack.c.b16 %v524, %v524
    %v557 = vpack.c.b16 %v525, %v525
    %v558 = vpack.c.b16 %v526, %v526
    %v559 = vpack.c.b16 %v527, %v527
    %v560 = vpack.c.b16 %v528, %v528
    %v561 = vpack.c.b16 %v529, %v529
    %v562 = vpack.c.b16 %v530, %v530
    %v563 = vpack.c.b16 %v531, %v531
    %v564 = vpack.c.b16 %v532, %v532
    %v565 = vpack.c.b16 %v533, %v533
    %v566 = vpack.c.b16 %v534, %v534
    %v567 = vpack.c.b16 %v535, %v535
    %v568 = vpack.c.b16 %v536, %v536
    %v569 = vpack.c.b16 %v537, %v537
    %v570 = vpack.c.b16 %v538, %v538
    %v571 = vpack.c.b16 %v539, %v539
    %v572 = vpack.c.b16 %v540, %v540
    %v573 = vpack.c.b16 %v541, %v541
    %v574 = vpack.c.b16 %v542, %v542
    %v575 = vpack.c.b16 %v543, %v543
    %v576 = vpack.c.b16 %v544, %v544
    %609 = vst [vmem:[#allocation2] sm:$0xf] %v545
    %610 = vst [vmem:[#allocation2 + $0x4] sm:$0xf] %v546
    %611 = vst [vmem:[#allocation2 + $0x8] sm:$0xf] %v547
    %612 = vst [vmem:[#allocation2 + $0xc] sm:$0xf] %v548
    %613 = vst [vmem:[#allocation2 + $0x10] sm:$0xf] %v549
    %614 = vst [vmem:[#allocation2 + $0x14] sm:$0xf] %v550
    %615 = vst [vmem:[#allocation2 + $0x18] sm:$0xf] %v551
    %616 = vst [vmem:[#allocation2 + $0x1c] sm:$0xf] %v552
    %617 = vst [vmem:[#allocation2 + $0x20] sm:$0xf] %v553
    %618 = vst [vmem:[#allocation2 + $0x24] sm:$0xf] %v554
    %619 = vst [vmem:[#allocation2 + $0x28] sm:$0xf] %v555
    %620 = vst [vmem:[#allocation2 + $0x2c] sm:$0xf] %v556
    %621 = vst [vmem:[#allocation2 + $0x30] sm:$0xf] %v557
    %622 = vst [vmem:[#allocation2 + $0x34] sm:$0xf] %v558
    %623 = vst [vmem:[#allocation2 + $0x38] sm:$0xf] %v559
    %624 = vst [vmem:[#allocation2 + $0x3c] sm:$0xf] %v560
    %625 = vst [vmem:[#allocation2 + $0x40] sm:$0xf] %v561
    %626 = vst [vmem:[#allocation2 + $0x44] sm:$0xf] %v562
    %627 = vst [vmem:[#allocation2 + $0x48] sm:$0xf] %v563
    %628 = vst [vmem:[#allocation2 + $0x4c] sm:$0xf] %v564
    %629 = vst [vmem:[#allocation2 + $0x50] sm:$0xf] %v565
    %630 = vst [vmem:[#allocation2 + $0x54] sm:$0xf] %v566
    %631 = vst [vmem:[#allocation2 + $0x58] sm:$0xf] %v567
    %632 = vst [vmem:[#allocation2 + $0x5c] sm:$0xf] %v568
    %633 = vst [vmem:[#allocation2 + $0x60] sm:$0xf] %v569
    %634 = vst [vmem:[#allocation2 + $0x64] sm:$0xf] %v570
    %635 = vst [vmem:[#allocation2 + $0x68] sm:$0xf] %v571
    %636 = vst [vmem:[#allocation2 + $0x6c] sm:$0xf] %v572
    %637 = vst [vmem:[#allocation2 + $0x70] sm:$0xf] %v573
    %638 = vst [vmem:[#allocation2 + $0x74] sm:$0xf] %v574
    %639 = vst [vmem:[#allocation2 + $0x78] sm:$0xf] %v575
    %640 = vst [vmem:[#allocation2 + $0x7c] sm:$0xf] %v576
    // Predicated region
    $region10: #{tpu_custom_call.1} parent=1 // pred_check
      _
    $region11: #{tpu_custom_call.1} parent=1 // pred_check_branch
      %642 = sbr.rel (0) target = $region13
    $region12: #{tpu_custom_call.1} parent=1 // pred_region
      %s644 = ssub.s32 2048, 2048
      %645 = vsyncadd [#allocation3], %s644
      %s646 = sshll.u32 [#allocation2], 4
      %s647 = int_to_ptr.vmem [resolvable:$true] %s646
      %652 = dma.vmem_to_hbm [thread:$0]  %s647, 2048, %s2, [#allocation3], 64, 64, 4
    $region13: #{tpu_custom_call.1} parent=1 // pred_fallthru
      _
    // Predicated region
    $region14: #{tpu_custom_call.1} parent=1 // pred_check
      _
    $region15: #{tpu_custom_call.1} parent=1 // pred_check_branch
      %654 = sbr.rel (0) target = $region17
    $region16: #{tpu_custom_call.1} parent=1 // pred_region
      %655 = dma.done [#allocation3], 2048
    $region17: #{tpu_custom_call.1} parent=1 // pred_fallthru
      _
    %656 = vsyncpa [#allocation3], 1

</llo_original>
